<compile_context>
chip_gen: v7x
topology: tpu7x:2x2x1
jax: 0.10.0
libtpu: 0.0.40
codegen_flags: <defaults>
</compile_context>

<pallas_src>
import math

import jax
import jax.numpy as jnp
from jax.experimental import pallas as pl
from jax.experimental.pallas import tpu as pltpu


def qnet_kernel(x_ref, w1_ref, b1_ref, w2_ref, b2_ref, w3_ref, b3_ref, o_ref):
    # x_ref: (state_dim, TM) feature-major; weights resident (constant index_maps).
    # Cast x to the weight dtype inside the kernel (in-VMEM, no extra HBM pass).
    x = x_ref[...].astype(w1_ref.dtype)
    w1 = w1_ref[...]                    # (64, state_dim)
    w2 = w2_ref[...]                    # (64, 64)
    w3 = w3_ref[...]                    # (nb_actions, 64)

    # L1: (64, state_dim) @ (state_dim, TM) -> (64, TM), f32 MXU accumulation.
    h1 = jnp.dot(w1, x, preferred_element_type=jnp.float32)
    # f32 bias + ReLU (valid on v5e, which has no bf16 VPU), then bf16 for the MXU.
    h1 = jnp.maximum(h1 + b1_ref[...], 0.0).astype(w2.dtype)

    h2 = jnp.dot(w2, h1, preferred_element_type=jnp.float32)     # (64, TM)
    h2 = jnp.maximum(h2 + b2_ref[...], 0.0).astype(w3.dtype)

    out = jnp.dot(w3, h2, preferred_element_type=jnp.float32)    # (nb_actions, TM)
    o_ref[...] = (out + b3_ref[...]).astype(o_ref.dtype)


def _round_up(n, m):
    return ((n + m - 1) // m) * m


def qnetwork_6464_forward(x, params, *, block_rows=32768,
                          weight_dtype=jnp.bfloat16,
                          x_feature_major=False,
                          feature_major_output=False):
    """Forward pass of QNetwork_6464.

    x: (B, state_dim) (or (state_dim, B) if x_feature_major=True).
    params use PyTorch layout: W (out, in), b (out, 1).
    Returns (B, nb_actions), or (nb_actions, B) if feature_major_output=True.
    """
    if x_feature_major:
        state_dim, B = x.shape
    else:
        B, state_dim = x.shape
        # Feature-major layout for the kernel (ideally fused into the producer).
        x = x.T                                                   # (state_dim, B)

    w1, b1 = params["w1"], params["b1"]
    w2, b2 = params["w2"], params["b2"]
    w3, b3 = params["w3"], params["b3"]
    nb_actions = w3.shape[0]
    h1_dim = w1.shape[0]
    h2_dim = w2.shape[0]

    # One-time tiny (~22 KB) weight cast; biases stay f32 for exact bias/ReLU.
    if weight_dtype is not None:
        w1 = w1.astype(weight_dtype)
        w2 = w2.astype(weight_dtype)
        w3 = w3.astype(weight_dtype)

    # Batch tiling: lane-aligned tiles (multiple of 128); >=2 grid steps for any
    # batch big enough so the x DMA is double-buffered and v7x megacore splits.
    num_tiles = pl.cdiv(B, block_rows)
    if num_tiles < 2 and B > 256:
        num_tiles = 2
    tm = max(128, _round_up(pl.cdiv(B, num_tiles), 128))
    b_pad = tm * num_tiles

    if b_pad != B:
        x = jnp.pad(x, ((0, 0), (0, b_pad - B)))                  # pad batch (lanes)

    out = pl.pallas_call(
        qnet_kernel,
        out_shape=jax.ShapeDtypeStruct((nb_actions, b_pad), jnp.float32),
        grid=(num_tiles,),
        in_specs=[
            pl.BlockSpec((state_dim, tm), lambda i: (0, i)),      # x: streamed, lane-dense
            pl.BlockSpec((h1_dim, state_dim), lambda i: (0, 0)),  # w1: resident
            pl.BlockSpec((h1_dim, 1), lambda i: (0, 0)),          # b1: resident
            pl.BlockSpec((h2_dim, h1_dim), lambda i: (0, 0)),     # w2: resident
            pl.BlockSpec((h2_dim, 1), lambda i: (0, 0)),          # b2: resident
            pl.BlockSpec((nb_actions, h2_dim), lambda i: (0, 0)), # w3: resident (unpadded)
            pl.BlockSpec((nb_actions, 1), lambda i: (0, 0)),      # b3: resident (unpadded)
        ],
        out_specs=pl.BlockSpec((nb_actions, tm), lambda i: (0, i)),
        compiler_params=pltpu.CompilerParams(
            dimension_semantics=("parallel",),          # megacore split on v7x
            vmem_limit_bytes=32 * 1024 * 1024,
        ),
    )(x, w1, b1, w2, b2, w3, b3)

    out = out[:, :B]                                    # drop batch padding
    if feature_major_output:
        return out                                      # (nb_actions, B), no transpose pass
    return out.T                                        # PyTorch layout (B, nb_actions)


def kaiming_uniform(key, out_features, in_features):
    # torch.nn.init.kaiming_uniform_ defaults (a=0, fan_in, leaky_relu):
    # gain = sqrt(2), bound = gain * sqrt(3 / fan_in) = sqrt(6 / fan_in).
    bound = math.sqrt(6.0 / in_features)
    return jax.random.uniform(
        key, (out_features, in_features), dtype=jnp.float32,
        minval=-bound, maxval=bound)


def init_params(key, state_dim=16, nb_actions=4):
    k1, k2, k3 = jax.random.split(key, 3)
    return {
        "w1": kaiming_uniform(k1, 64, state_dim),
        "b1": jnp.zeros((64, 1), jnp.float32),
        "w2": kaiming_uniform(k2, 64, 64),
        "b2": jnp.zeros((64, 1), jnp.float32),
        "w3": kaiming_uniform(k3, nb_actions, 64),
        "b3": jnp.zeros((nb_actions, 1), jnp.float32),
    }


def reference_forward(x, params):
    h1 = jnp.maximum(x @ params["w1"].T + params["b1"][:, 0], 0.0)
    h2 = jnp.maximum(h1 @ params["w2"].T + params["b2"][:, 0], 0.0)
    return h2 @ params["w3"].T + params["b3"][:, 0]


if __name__ == "__main__":
    key = jax.random.PRNGKey(0)
    k_x, k_p, k_x2 = jax.random.split(key, 3)

    batch, state_dim, nb_actions = 8, 16, 4
    x = jax.random.normal(k_x, (batch, state_dim), dtype=jnp.float32)
    params = init_params(k_p, state_dim=state_dim, nb_actions=nb_actions)
    ref = reference_forward(x, params)

    # bf16-weight path (default), single tile.  f32 MXU accumulation + f32
    # bias/ReLU keep the error at the bf16-rounding level.
    out = jax.block_until_ready(qnetwork_6464_forward(x, params))
    assert out.shape == (batch, nb_actions)
    assert jnp.allclose(out, ref, atol=5e-2, rtol=5e-2)

    # Full-f32 path (weight_dtype=None) for tight numerical comparison.
    out_f32 = jax.block_until_ready(
        qnetwork_6464_forward(x, params, weight_dtype=None))
    assert jnp.allclose(out_f32, ref, atol=1e-4, rtol=1e-4)

    # Multi-tile + ragged-tail path (grid > 1, batch padded to tile multiple),
    # feature-major output variant (no trailing transpose pass).
    x2 = jax.random.normal(k_x2, (300, state_dim), dtype=jnp.float32)
    out2 = jax.block_until_ready(
        qnetwork_6464_forward(x2, params, block_rows=128,
                              feature_major_output=True))
    assert out2.shape == (nb_actions, 300)
    assert jnp.allclose(out2.T, reference_forward(x2, params),
                        atol=5e-2, rtol=5e-2)

    # Caller-provided feature-major x (transpose fused upstream).
    out3 = jax.block_until_ready(
        qnetwork_6464_forward(x.T, params, x_feature_major=True))
    assert out3.shape == (batch, nb_actions)
    assert jnp.allclose(out3, ref, atol=5e-2, rtol=5e-2)

    print("KERNEL_OK")
</pallas_src>

<mosaic_0001>
module attributes {stable_mosaic.version = 11 : i64} {
  func.func @qnet_kernel(%arg0: i32, %arg1: memref<16x128xf32, #tpu.memory_space<vmem>>, %arg2: memref<64x16xbf16, #tpu.memory_space<vmem>>, %arg3: memref<64x1xf32, #tpu.memory_space<vmem>>, %arg4: memref<64x64xbf16, #tpu.memory_space<vmem>>, %arg5: memref<64x1xf32, #tpu.memory_space<vmem>>, %arg6: memref<4x64xbf16, #tpu.memory_space<vmem>>, %arg7: memref<4x1xf32, #tpu.memory_space<vmem>>, %arg8: memref<4x128xf32, #tpu.memory_space<vmem>>) attributes {dimension_semantics = [#tpu.dimension_semantics<parallel>], iteration_bounds = array<i64: 1>, scalar_prefetch = 0 : i64, scratch_operands = 0 : i64, tpu.core_type = #tpu.core_type<tc>, window_params = [{transform_indices = @transform_0, window_bounds = array<i64: 16, 128>}, {pipeline_mode = #tpu.pipeline_mode<synchronous>, transform_indices = @transform_1, window_bounds = array<i64: 64, 16>}, {pipeline_mode = #tpu.pipeline_mode<synchronous>, transform_indices = @transform_2, window_bounds = array<i64: 64, 1>}, {pipeline_mode = #tpu.pipeline_mode<synchronous>, transform_indices = @transform_3, window_bounds = array<i64: 64, 64>}, {pipeline_mode = #tpu.pipeline_mode<synchronous>, transform_indices = @transform_4, window_bounds = array<i64: 64, 1>}, {pipeline_mode = #tpu.pipeline_mode<synchronous>, transform_indices = @transform_5, window_bounds = array<i64: 4, 64>}, {pipeline_mode = #tpu.pipeline_mode<synchronous>, transform_indices = @transform_6, window_bounds = array<i64: 4, 1>}, {transform_indices = @transform_7, window_bounds = array<i64: 4, 128>}]} {
    %c0 = arith.constant 0 : index
    %c0_0 = arith.constant 0 : index
    %0 = vector.load %arg1[%c0, %c0_0] : memref<16x128xf32, #tpu.memory_space<vmem>>, vector<16x128xf32>
    %1 = arith.truncf %0 : vector<16x128xf32> to vector<16x128xbf16>
    %c0_1 = arith.constant 0 : index
    %c0_2 = arith.constant 0 : index
    %2 = vector.load %arg2[%c0_1, %c0_2] : memref<64x16xbf16, #tpu.memory_space<vmem>>, vector<64x16xbf16>
    %c0_3 = arith.constant 0 : index
    %c0_4 = arith.constant 0 : index
    %3 = vector.load %arg4[%c0_3, %c0_4] : memref<64x64xbf16, #tpu.memory_space<vmem>>, vector<64x64xbf16>
    %c0_5 = arith.constant 0 : index
    %c0_6 = arith.constant 0 : index
    %4 = vector.load %arg6[%c0_5, %c0_6] : memref<4x64xbf16, #tpu.memory_space<vmem>>, vector<4x64xbf16>
    %cst = arith.constant dense<0.000000e+00> : vector<64x128xf32>
    %5 = tpu.matmul %2, %1, %cst {dimension_numbers = #tpu.dot_dimension_numbers<[1], [0], [0], [1], [0, 0, 1, 1], [], []>} : vector<64x16xbf16>, vector<16x128xbf16>, vector<64x128xf32> -> vector<64x128xf32>
    %c0_7 = arith.constant 0 : index
    %c0_8 = arith.constant 0 : index
    %6 = vector.load %arg3[%c0_7, %c0_8] : memref<64x1xf32, #tpu.memory_space<vmem>>, vector<64x1xf32>
    %7 = vector.broadcast %6 : vector<64x1xf32> to vector<64x128xf32>
    %8 = arith.addf %5, %7 : vector<64x128xf32>
    %cst_9 = arith.constant 0.000000e+00 : f32
    %9 = vector.broadcast %cst_9 : f32 to vector<64x128xf32>
    %10 = arith.maximumf %8, %9 : vector<64x128xf32>
    %11 = arith.truncf %10 : vector<64x128xf32> to vector<64x128xbf16>
    %cst_10 = arith.constant dense<0.000000e+00> : vector<64x128xf32>
    %12 = tpu.matmul %3, %11, %cst_10 {dimension_numbers = #tpu.dot_dimension_numbers<[1], [0], [0], [1], [0, 0, 1, 1], [], []>} : vector<64x64xbf16>, vector<64x128xbf16>, vector<64x128xf32> -> vector<64x128xf32>
    %c0_11 = arith.constant 0 : index
    %c0_12 = arith.constant 0 : index
    %13 = vector.load %arg5[%c0_11, %c0_12] : memref<64x1xf32, #tpu.memory_space<vmem>>, vector<64x1xf32>
    %14 = vector.broadcast %13 : vector<64x1xf32> to vector<64x128xf32>
    %15 = arith.addf %12, %14 : vector<64x128xf32>
    %cst_13 = arith.constant 0.000000e+00 : f32
    %16 = vector.broadcast %cst_13 : f32 to vector<64x128xf32>
    %17 = arith.maximumf %15, %16 : vector<64x128xf32>
    %18 = arith.truncf %17 : vector<64x128xf32> to vector<64x128xbf16>
    %cst_14 = arith.constant dense<0.000000e+00> : vector<4x128xf32>
    %19 = tpu.matmul %4, %18, %cst_14 {dimension_numbers = #tpu.dot_dimension_numbers<[1], [0], [0], [1], [0, 0, 1, 1], [], []>} : vector<4x64xbf16>, vector<64x128xbf16>, vector<4x128xf32> -> vector<4x128xf32>
    %c0_15 = arith.constant 0 : index
    %c0_16 = arith.constant 0 : index
    %20 = vector.load %arg7[%c0_15, %c0_16] : memref<4x1xf32, #tpu.memory_space<vmem>>, vector<4x1xf32>
    %21 = vector.broadcast %20 : vector<4x1xf32> to vector<4x128xf32>
    %22 = arith.addf %19, %21 : vector<4x128xf32>
    %c0_17 = arith.constant 0 : index
    %c0_18 = arith.constant 0 : index
    %23 = vector.load %arg8[%c0_17, %c0_18] : memref<4x128xf32, #tpu.memory_space<vmem>>, vector<4x128xf32>
    tpu.vector_store %arg8[%c0_17, %c0_18], %22 {strides = array<i32>} : memref<4x128xf32, #tpu.memory_space<vmem>>, vector<4x128xf32>,
    return
  }
  func.func @transform_0(%arg0: i32) -> (i32, i32) {
    %c0_i32 = arith.constant 0 : i32
    %c0_i32_0 = arith.constant 0 : i32
    return %c0_i32, %arg0 : i32, i32
  }
  func.func @transform_1(%arg0: i32) -> (i32, i32) {
    %c0_i32 = arith.constant 0 : i32
    %c0_i32_0 = arith.constant 0 : i32
    %c0_i32_1 = arith.constant 0 : i32
    return %c0_i32, %c0_i32_0 : i32, i32
  }
  func.func @transform_2(%arg0: i32) -> (i32, i32) {
    %c0_i32 = arith.constant 0 : i32
    %c0_i32_0 = arith.constant 0 : i32
    %c0_i32_1 = arith.constant 0 : i32
    return %c0_i32, %c0_i32_0 : i32, i32
  }
  func.func @transform_3(%arg0: i32) -> (i32, i32) {
    %c0_i32 = arith.constant 0 : i32
    %c0_i32_0 = arith.constant 0 : i32
    %c0_i32_1 = arith.constant 0 : i32
    return %c0_i32, %c0_i32_0 : i32, i32
  }
  func.func @transform_4(%arg0: i32) -> (i32, i32) {
    %c0_i32 = arith.constant 0 : i32
    %c0_i32_0 = arith.constant 0 : i32
    %c0_i32_1 = arith.constant 0 : i32
    return %c0_i32, %c0_i32_0 : i32, i32
  }
  func.func @transform_5(%arg0: i32) -> (i32, i32) {
    %c0_i32 = arith.constant 0 : i32
    %c0_i32_0 = arith.constant 0 : i32
    %c0_i32_1 = arith.constant 0 : i32
    return %c0_i32, %c0_i32_0 : i32, i32
  }
  func.func @transform_6(%arg0: i32) -> (i32, i32) {
    %c0_i32 = arith.constant 0 : i32
    %c0_i32_0 = arith.constant 0 : i32
    %c0_i32_1 = arith.constant 0 : i32
    return %c0_i32, %c0_i32_0 : i32, i32
  }
  func.func @transform_7(%arg0: i32) -> (i32, i32) {
    %c0_i32 = arith.constant 0 : i32
    %c0_i32_0 = arith.constant 0 : i32
    return %c0_i32, %arg0 : i32, i32
  }
}

</mosaic_0001>

<llo_original>
// kernel: tpu_custom_call.1
$region0: #{tpu_custom_call.1}
  #allocation0 [shape = 'u32[]', space=smem, size = 0x4, offset = 0x4, fixed_abs, tag = 'smem constant byte address 0x4 - core index']
  #allocation1 [shape = 'u32[144,128]{1,0:T(1,128)}', space=vmem, size = 0x12000, scoped, tag = 'internal scratch']
  %s0 = inlined_call_operand.vmem [shape: f32[16,128], index: 0, kind: input, shape index: {}]
  %s1 = inlined_call_operand.vmem [shape: bf16[64,16], index: 1, kind: input, shape index: {}]
  %s2 = inlined_call_operand.vmem [shape: f32[64,1], index: 2, kind: input, shape index: {}]
  %s3 = inlined_call_operand.vmem [shape: bf16[64,64], index: 3, kind: input, shape index: {}]
  %s4 = inlined_call_operand.vmem [shape: f32[64,1], index: 4, kind: input, shape index: {}]
  %s5 = inlined_call_operand.vmem [shape: bf16[4,64], index: 5, kind: input, shape index: {}]
  %s6 = inlined_call_operand.vmem [shape: f32[4,1], index: 6, kind: input, shape index: {}]
  %s7 = inlined_call_operand.hbm [shape: f32[4,128], index: 7, kind: output, shape index: {}]
  %s8 = sld [smem:[#allocation0]]
  $region38: #{tpu_custom_call.1} parent=0
    _
  %s10 = ssub.s32 1, %s8
  %s11 = scalar_select 0, %s10, %s8
  $region1: #{tpu_custom_call.1} parent=0
    #allocation2 [shape = 'u8[2048]{0}', space=vmem, size = 0x800, scoped, tag = 'output window, operand 0, single buffered']
    #allocation3 [shape = 's32[1]{0}', space=sflag, size = 0x4, scoped, tag = 'scoped memory for tpu_custom_call.1']
    %12 = vsyncpa [#allocation3], 0
    // Predicated region
    $region2: #{tpu_custom_call.1} parent=1 // pred_check
      _
    $region3: #{tpu_custom_call.1} parent=1 // pred_check_branch
      %14 = sbr.rel (0) target = $region5
    $region4: #{tpu_custom_call.1} parent=1 // pred_region
      _
    $region5: #{tpu_custom_call.1} parent=1 // pred_fallthru
      _
    // Predicated region
    $region6: #{tpu_custom_call.1} parent=1 // pred_check
      _
    $region7: #{tpu_custom_call.1} parent=1 // pred_check_branch
      %16 = sbr.rel (0) target = $region9
    $region8: #{tpu_custom_call.1} parent=1 // pred_region
      _
    $region9: #{tpu_custom_call.1} parent=1 // pred_fallthru
      _
    // Predicated region
    $region10: #{tpu_custom_call.1} parent=1 // pred_check
      _
    $region11: #{tpu_custom_call.1} parent=1 // pred_check_branch
      %18 = sbr.rel (0) target = $region13
    $region12: #{tpu_custom_call.1} parent=1 // pred_region
      _
    $region13: #{tpu_custom_call.1} parent=1 // pred_fallthru
      _
    // Predicated region
    $region14: #{tpu_custom_call.1} parent=1 // pred_check
      _
    $region15: #{tpu_custom_call.1} parent=1 // pred_check_branch
      %20 = sbr.rel (0) target = $region17
    $region16: #{tpu_custom_call.1} parent=1 // pred_region
      _
    $region17: #{tpu_custom_call.1} parent=1 // pred_fallthru
      _
    // Predicated region
    $region18: #{tpu_custom_call.1} parent=1 // pred_check
      _
    $region19: #{tpu_custom_call.1} parent=1 // pred_check_branch
      %22 = sbr.rel (0) target = $region21
    $region20: #{tpu_custom_call.1} parent=1 // pred_region
      _
    $region21: #{tpu_custom_call.1} parent=1 // pred_fallthru
      _
    // Predicated region
    $region22: #{tpu_custom_call.1} parent=1 // pred_check
      _
    $region23: #{tpu_custom_call.1} parent=1 // pred_check_branch
      %24 = sbr.rel (0) target = $region25
    $region24: #{tpu_custom_call.1} parent=1 // pred_region
      _
    $region25: #{tpu_custom_call.1} parent=1 // pred_fallthru
      _
    // Predicated region
    $region26: #{tpu_custom_call.1} parent=1 // pred_check
      _
    $region27: #{tpu_custom_call.1} parent=1 // pred_check_branch
      %26 = sbr.rel (0) target = $region29
    $region28: #{tpu_custom_call.1} parent=1 // pred_region
      _
    $region29: #{tpu_custom_call.1} parent=1 // pred_fallthru
      _
    %v28 = vld [vmem:[%s0] sm:$0xff]
    %v29 = vld [vmem:[%s0 + $0x8] sm:$0xff]
    %v30 = vpack.c.bf16 %v29, %v28
    %v31 = vld [vmem:[%s1] sm:$0xf]
    %v32 = vld [vmem:[%s1 + $0x4] sm:$0xf]
    %v33 = vld [vmem:[%s1 + $0x8] sm:$0xf]
    %v34 = vld [vmem:[%s1 + $0xc] sm:$0xf]
    %v35 = vld [vmem:[%s1 + $0x10] sm:$0xf]
    %v36 = vld [vmem:[%s1 + $0x14] sm:$0xf]
    %v37 = vld [vmem:[%s1 + $0x18] sm:$0xf]
    %v38 = vld [vmem:[%s1 + $0x1c] sm:$0xf]
    %v39 = vld [vmem:[%s3] sm:$0xf]
    %v40 = vld [vmem:[%s3 + $0x4] sm:$0xf]
    %v41 = vld [vmem:[%s3 + $0x8] sm:$0xf]
    %v42 = vld [vmem:[%s3 + $0xc] sm:$0xf]
    %v43 = vld [vmem:[%s3 + $0x10] sm:$0xf]
    %v44 = vld [vmem:[%s3 + $0x14] sm:$0xf]
    %v45 = vld [vmem:[%s3 + $0x18] sm:$0xf]
    %v46 = vld [vmem:[%s3 + $0x1c] sm:$0xf]
    %v47 = vld [vmem:[%s5] sm:$0x3]
    %v48 = vld [vmem:[%s2] sm:$0xff]
    %v49 = vld [vmem:[%s2 + $0x8] sm:$0xff]
    %v50 = vld [vmem:[%s2 + $0x10] sm:$0xff]
    %v51 = vld [vmem:[%s2 + $0x18] sm:$0xff]
    %v52 = vld [vmem:[%s2 + $0x20] sm:$0xff]
    %v53 = vld [vmem:[%s2 + $0x28] sm:$0xff]
    %v54 = vld [vmem:[%s2 + $0x30] sm:$0xff]
    %v55 = vld [vmem:[%s2 + $0x38] sm:$0xff]
    %57 = vset.pattern.permute.xlu0 0
    %58 = vperm.xlu0 %57, %v48
    %v59 = vpop.permute.xlu0 %58
    %62 = vset.pattern.permute.xlu0 0
    %63 = vperm.xlu0 %62, %v49
    %v64 = vpop.permute.xlu0 %63
    %67 = vset.pattern.permute.xlu0 0
    %68 = vperm.xlu0 %67, %v50
    %v69 = vpop.permute.xlu0 %68
    %72 = vset.pattern.permute.xlu0 0
    %73 = vperm.xlu0 %72, %v51
    %v74 = vpop.permute.xlu0 %73
    %77 = vset.pattern.permute.xlu0 0
    %78 = vperm.xlu0 %77, %v52
    %v79 = vpop.permute.xlu0 %78
    %82 = vset.pattern.permute.xlu0 0
    %83 = vperm.xlu0 %82, %v53
    %v84 = vpop.permute.xlu0 %83
    %87 = vset.pattern.permute.xlu0 0
    %88 = vperm.xlu0 %87, %v54
    %v89 = vpop.permute.xlu0 %88
    %92 = vset.pattern.permute.xlu0 0
    %93 = vperm.xlu0 %92, %v55
    %v94 = vpop.permute.xlu0 %93
    %v104 = vunpack.c.l.b16 %v31
    %v105 = vunpack.c.l.b16 %v32
    %v106 = vunpack.c.l.b16 %v33
    %v107 = vunpack.c.l.b16 %v34
    %v108 = vunpack.c.l.b16 %v35
    %v109 = vunpack.c.l.b16 %v36
    %v110 = vunpack.c.l.b16 %v37
    %v111 = vunpack.c.l.b16 %v38
    %v112 = vpack.c.b16 %v105, %v104
    %v113 = vpack.c.b16 %v107, %v106
    %v114 = vpack.c.b16 %v109, %v108
    %v115 = vpack.c.b16 %v111, %v110
    %vm116 = vcmask 130048
    %v118 = vsel %vm116, %v112, 0
    %v121 = vsel %vm116, %v113, 0
    %v124 = vsel %vm116, %v114, 0
    %v127 = vsel %vm116, %v115, 0
    %129 = vmatprep.subr.bf16.mxu0 0
    %130 = vmatpush1.bf16.msra.mxu0 %v30
    %131 = vmatprep.subr.bf16.mxu0 0
    %132 = vmatpush1.bf16.msra.mxu0 0
    %133 = vmatprep.subr.bf16.mxu0 0
    %134 = vmatpush1.bf16.msra.mxu0 0
    %135 = vmatprep.subr.bf16.mxu0 0
    %136 = vmatpush1.bf16.msra.mxu0 0
    %137 = vmatprep.subr.bf16.mxu0 0
    %138 = vmatpush1.bf16.msra.mxu0 0
    %139 = vmatprep.subr.bf16.mxu0 0
    %140 = vmatpush1.bf16.msra.mxu0 0
    %141 = vmatprep.subr.bf16.mxu0 0
    %142 = vmatpush1.bf16.msra.mxu0 0
    %143 = vmatprep.subr.bf16.mxu0 0
    %144 = vmatpush1.bf16.msra.mxu0 0
    %145 = vmatprep.subr.bf16.mxu0 0
    %146 = vmatpush1.bf16.msra.mxu0 0
    %147 = vmatprep.subr.bf16.mxu0 0
    %148 = vmatpush1.bf16.msra.mxu0 0
    %149 = vmatprep.subr.bf16.mxu0 0
    %150 = vmatpush1.bf16.msra.mxu0 0
    %151 = vmatprep.subr.bf16.mxu0 0
    %152 = vmatpush1.bf16.msra.mxu0 0
    %153 = vmatprep.subr.bf16.mxu0 0
    %154 = vmatpush1.bf16.msra.mxu0 0
    %155 = vmatprep.subr.bf16.mxu0 0
    %156 = vmatpush1.bf16.msra.mxu0 0
    %157 = vmatprep.subr.bf16.mxu0 0
    %158 = vmatpush1.bf16.msra.mxu0 0
    %159 = vmatprep.subr.bf16.mxu0 0
    %160 = vmatpush1.bf16.msra.mxu0 0
    %161 = vmatprep.mubr.bf16.mxu0 0
    %162 = vmatmul.mubr.bf16.gmra.mrb[0].mxu0 %v118
    %v163 = vpop.f32.mrb[0].mxu0
    %v164 = vadd.f32 %v59, %v163
    %v165 = vpop.f32.mrb[0].mxu0
    %v166 = vpop.f32.mrb[0].mxu0
    %v167 = vadd.f32 %v64, %v166
    %v168 = vpop.f32.mrb[0].mxu0
    %169 = vmatprep.mubr.bf16.mxu0 0
    %170 = vmatmul.mubr.bf16.gmra.mrb[0].mxu0 %v121
    %v171 = vpop.f32.mrb[0].mxu0
    %v172 = vadd.f32 %v69, %v171
    %v173 = vpop.f32.mrb[0].mxu0
    %v174 = vpop.f32.mrb[0].mxu0
    %v175 = vadd.f32 %v74, %v174
    %v176 = vpop.f32.mrb[0].mxu0
    %177 = vmatprep.mubr.bf16.mxu0 0
    %178 = vmatmul.mubr.bf16.gmra.mrb[0].mxu0 %v124
    %v179 = vpop.f32.mrb[0].mxu0
    %v180 = vadd.f32 %v79, %v179
    %v181 = vpop.f32.mrb[0].mxu0
    %v182 = vpop.f32.mrb[0].mxu0
    %v183 = vadd.f32 %v84, %v182
    %v184 = vpop.f32.mrb[0].mxu0
    %185 = vmatprep.mubr.bf16.mxu0 0
    %186 = vmatmul.mubr.bf16.gmra.mrb[0].mxu0 %v127
    %v187 = vpop.f32.mrb[0].mxu0
    %v188 = vadd.f32 %v89, %v187
    %v189 = vpop.f32.mrb[0].mxu0
    %v190 = vpop.f32.mrb[0].mxu0
    %v191 = vadd.f32 %v94, %v190
    %v192 = vpop.f32.mrb[0].mxu0
    %193 = vdwg.mxu0
    %v194 = vmax.f32 %v164, 0.0
    %v195 = vmax.f32 %v167, 0.0
    %v196 = vmax.f32 %v172, 0.0
    %v197 = vmax.f32 %v175, 0.0
    %v198 = vmax.f32 %v180, 0.0
    %v199 = vmax.f32 %v183, 0.0
    %v200 = vmax.f32 %v188, 0.0
    %v201 = vmax.f32 %v191, 0.0
    %v202 = vpack.c.bf16 %v195, %v194
    %v203 = vpack.c.bf16 %v197, %v196
    %v204 = vpack.c.bf16 %v199, %v198
    %v205 = vpack.c.bf16 %v201, %v200
    %v206 = vld [vmem:[%s4] sm:$0xff]
    %v207 = vld [vmem:[%s4 + $0x8] sm:$0xff]
    %v208 = vld [vmem:[%s4 + $0x10] sm:$0xff]
    %v209 = vld [vmem:[%s4 + $0x18] sm:$0xff]
    %v210 = vld [vmem:[%s4 + $0x20] sm:$0xff]
    %v211 = vld [vmem:[%s4 + $0x28] sm:$0xff]
    %v212 = vld [vmem:[%s4 + $0x30] sm:$0xff]
    %v213 = vld [vmem:[%s4 + $0x38] sm:$0xff]
    %215 = vset.pattern.permute.xlu0 0
    %216 = vperm.xlu0 %215, %v206
    %v217 = vpop.permute.xlu0 %216
    %220 = vset.pattern.permute.xlu0 0
    %221 = vperm.xlu0 %220, %v207
    %v222 = vpop.permute.xlu0 %221
    %225 = vset.pattern.permute.xlu0 0
    %226 = vperm.xlu0 %225, %v208
    %v227 = vpop.permute.xlu0 %226
    %230 = vset.pattern.permute.xlu0 0
    %231 = vperm.xlu0 %230, %v209
    %v232 = vpop.permute.xlu0 %231
    %235 = vset.pattern.permute.xlu0 0
    %236 = vperm.xlu0 %235, %v210
    %v237 = vpop.permute.xlu0 %236
    %240 = vset.pattern.permute.xlu0 0
    %241 = vperm.xlu0 %240, %v211
    %v242 = vpop.permute.xlu0 %241
    %245 = vset.pattern.permute.xlu0 0
    %246 = vperm.xlu0 %245, %v212
    %v247 = vpop.permute.xlu0 %246
    %250 = vset.pattern.permute.xlu0 0
    %251 = vperm.xlu0 %250, %v213
    %v252 = vpop.permute.xlu0 %251
    %v262 = vunpack.c.l.b16 %v39
    %v263 = vunpack.c.l.b16 %v40
    %v264 = vunpack.c.l.b16 %v41
    %v265 = vunpack.c.l.b16 %v42
    %v266 = vunpack.c.l.b16 %v43
    %v267 = vunpack.c.l.b16 %v44
    %v268 = vunpack.c.l.b16 %v45
    %v269 = vunpack.c.l.b16 %v46
    %v270 = vpack.c.b16 %v263, %v262
    %v271 = vpack.c.b16 %v265, %v264
    %v272 = vpack.c.b16 %v267, %v266
    %v273 = vpack.c.b16 %v269, %v268
    %vm274 = vcmask 523264
    %v276 = vsel %vm274, %v270, 0
    %v279 = vsel %vm274, %v271, 0
    %v282 = vsel %vm274, %v272, 0
    %v285 = vsel %vm274, %v273, 0
    %287 = vmatprep.subr.bf16.mxu0 0
    %288 = vmatpush1.bf16.msra.mxu0 %v202
    %289 = vmatprep.subr.bf16.mxu0 0
    %290 = vmatpush1.bf16.msra.mxu0 %v203
    %291 = vmatprep.subr.bf16.mxu0 0
    %292 = vmatpush1.bf16.msra.mxu0 %v204
    %293 = vmatprep.subr.bf16.mxu0 0
    %294 = vmatpush1.bf16.msra.mxu0 %v205
    %295 = vmatprep.subr.bf16.mxu0 0
    %296 = vmatpush1.bf16.msra.mxu0 0
    %297 = vmatprep.subr.bf16.mxu0 0
    %298 = vmatpush1.bf16.msra.mxu0 0
    %299 = vmatprep.subr.bf16.mxu0 0
    %300 = vmatpush1.bf16.msra.mxu0 0
    %301 = vmatprep.subr.bf16.mxu0 0
    %302 = vmatpush1.bf16.msra.mxu0 0
    %303 = vmatprep.subr.bf16.mxu0 0
    %304 = vmatpush1.bf16.msra.mxu0 0
    %305 = vmatprep.subr.bf16.mxu0 0
    %306 = vmatpush1.bf16.msra.mxu0 0
    %307 = vmatprep.subr.bf16.mxu0 0
    %308 = vmatpush1.bf16.msra.mxu0 0
    %309 = vmatprep.subr.bf16.mxu0 0
    %310 = vmatpush1.bf16.msra.mxu0 0
    %311 = vmatprep.subr.bf16.mxu0 0
    %312 = vmatpush1.bf16.msra.mxu0 0
    %313 = vmatprep.subr.bf16.mxu0 0
    %314 = vmatpush1.bf16.msra.mxu0 0
    %315 = vmatprep.subr.bf16.mxu0 0
    %316 = vmatpush1.bf16.msra.mxu0 0
    %317 = vmatprep.subr.bf16.mxu0 0
    %318 = vmatpush1.bf16.msra.mxu0 0
    %319 = vmatprep.mubr.bf16.mxu0 0
    %320 = vmatmul.mubr.bf16.gmra.mrb[0].mxu0 %v276
    %v321 = vpop.f32.mrb[0].mxu0
    %v322 = vadd.f32 %v217, %v321
    %v323 = vpop.f32.mrb[0].mxu0
    %v324 = vpop.f32.mrb[0].mxu0
    %v325 = vadd.f32 %v222, %v324
    %v326 = vpop.f32.mrb[0].mxu0
    %327 = vmatprep.mubr.bf16.mxu0 0
    %328 = vmatmul.mubr.bf16.gmra.mrb[0].mxu0 %v279
    %v329 = vpop.f32.mrb[0].mxu0
    %v330 = vadd.f32 %v227, %v329
    %v331 = vpop.f32.mrb[0].mxu0
    %v332 = vpop.f32.mrb[0].mxu0
    %v333 = vadd.f32 %v232, %v332
    %v334 = vpop.f32.mrb[0].mxu0
    %335 = vmatprep.mubr.bf16.mxu0 0
    %336 = vmatmul.mubr.bf16.gmra.mrb[0].mxu0 %v282
    %v337 = vpop.f32.mrb[0].mxu0
    %v338 = vadd.f32 %v237, %v337
    %v339 = vpop.f32.mrb[0].mxu0
    %v340 = vpop.f32.mrb[0].mxu0
    %v341 = vadd.f32 %v242, %v340
    %v342 = vpop.f32.mrb[0].mxu0
    %343 = vmatprep.mubr.bf16.mxu0 0
    %344 = vmatmul.mubr.bf16.gmra.mrb[0].mxu0 %v285
    %v345 = vpop.f32.mrb[0].mxu0
    %v346 = vadd.f32 %v247, %v345
    %v347 = vpop.f32.mrb[0].mxu0
    %v348 = vpop.f32.mrb[0].mxu0
    %v349 = vadd.f32 %v252, %v348
    %v350 = vpop.f32.mrb[0].mxu0
    %351 = vdwg.mxu0
    %v352 = vmax.f32 %v322, 0.0
    %v353 = vmax.f32 %v325, 0.0
    %v354 = vmax.f32 %v330, 0.0
    %v355 = vmax.f32 %v333, 0.0
    %v356 = vmax.f32 %v338, 0.0
    %v357 = vmax.f32 %v341, 0.0
    %v358 = vmax.f32 %v346, 0.0
    %v359 = vmax.f32 %v349, 0.0
    %v360 = vpack.c.bf16 %v353, %v352
    %v361 = vpack.c.bf16 %v355, %v354
    %v362 = vpack.c.bf16 %v357, %v356
    %v363 = vpack.c.bf16 %v359, %v358
    %v364 = vld [vmem:[%s6] sm:$0xf]
    %366 = vset.pattern.permute.xlu0 0
    %367 = vperm.xlu0 %366, %v364
    %v368 = vpop.permute.xlu0 %367
    %v371 = vsel %vm274, %v47, 0
    %373 = vmatprep.subr.bf16.mxu0 0
    %374 = vmatpush1.bf16.msra.mxu0 %v360
    %375 = vmatprep.subr.bf16.mxu0 0
    %376 = vmatpush1.bf16.msra.mxu0 %v361
    %377 = vmatprep.subr.bf16.mxu0 0
    %378 = vmatpush1.bf16.msra.mxu0 %v362
    %379 = vmatprep.subr.bf16.mxu0 0
    %380 = vmatpush1.bf16.msra.mxu0 %v363
    %381 = vmatprep.subr.bf16.mxu0 0
    %382 = vmatpush1.bf16.msra.mxu0 0
    %383 = vmatprep.subr.bf16.mxu0 0
    %384 = vmatpush1.bf16.msra.mxu0 0
    %385 = vmatprep.subr.bf16.mxu0 0
    %386 = vmatpush1.bf16.msra.mxu0 0
    %387 = vmatprep.subr.bf16.mxu0 0
    %388 = vmatpush1.bf16.msra.mxu0 0
    %389 = vmatprep.subr.bf16.mxu0 0
    %390 = vmatpush1.bf16.msra.mxu0 0
    %391 = vmatprep.subr.bf16.mxu0 0
    %392 = vmatpush1.bf16.msra.mxu0 0
    %393 = vmatprep.subr.bf16.mxu0 0
    %394 = vmatpush1.bf16.msra.mxu0 0
    %395 = vmatprep.subr.bf16.mxu0 0
    %396 = vmatpush1.bf16.msra.mxu0 0
    %397 = vmatprep.subr.bf16.mxu0 0
    %398 = vmatpush1.bf16.msra.mxu0 0
    %399 = vmatprep.subr.bf16.mxu0 0
    %400 = vmatpush1.bf16.msra.mxu0 0
    %401 = vmatprep.subr.bf16.mxu0 0
    %402 = vmatpush1.bf16.msra.mxu0 0
    %403 = vmatprep.subr.bf16.mxu0 0
    %404 = vmatpush1.bf16.msra.mxu0 0
    %405 = vmatprep.mubr.bf16.mxu0 0
    %406 = vmatmul.mubr.bf16.gmra.mrb[0].mxu0 %v371
    %v407 = vpop.f32.mrb[0].mxu0
    %v408 = vadd.f32 %v368, %v407
    %v409 = vpop.f32.mrb[0].mxu0
    %v410 = vpop.f32.mrb[0].mxu0
    %v411 = vpop.f32.mrb[0].mxu0
    %412 = vdwg.mxu0
    %413 = vst [vmem:[#allocation2] sm:$0xf] %v408
    // Predicated region
    $region30: #{tpu_custom_call.1} parent=1 // pred_check
      _
    $region31: #{tpu_custom_call.1} parent=1 // pred_check_branch
      %415 = sbr.rel (0) target = $region33
    $region32: #{tpu_custom_call.1} parent=1 // pred_region
      %s417 = ssub.s32 64, 64
      %418 = vsyncadd [#allocation3], %s417
      %s420 = sshll.u32 [#allocation2], 4
      %s421 = int_to_ptr.vmem [resolvable:$true] %s420
      %423 = dma.vmem_to_hbm [thread:$0]  %s421, 64, %s7, [#allocation3]
    $region33: #{tpu_custom_call.1} parent=1 // pred_fallthru
      _
    // Predicated region
    $region34: #{tpu_custom_call.1} parent=1 // pred_check
      _
    $region35: #{tpu_custom_call.1} parent=1 // pred_check_branch
      %425 = sbr.rel (0) target = $region37
    $region36: #{tpu_custom_call.1} parent=1 // pred_region
      %426 = dma.done [#allocation3], 64
    $region37: #{tpu_custom_call.1} parent=1 // pred_fallthru
      _
    %427 = vsyncpa [#allocation3], 1

</llo_original>
